<compile_context>
chip_gen: v7x
topology: tpu7x:2x2x1
jax: 0.10.0
libtpu: 0.0.40
codegen_flags: <defaults>
</compile_context>

<pallas_src>
import math

import jax
import jax.numpy as jnp
from jax.experimental import pallas as pl
from jax.experimental.pallas import tpu as pltpu


# ----------------------------------------------------------------------------
# Pallas kernels
# ----------------------------------------------------------------------------
def attention_pool_kernel(w_ref, x_ref, o_ref):
    # w_ref: (1, D, HW, 1)  -- softmax over D, pre-computed in JAX
    # x_ref: (1, D, HW, C)  -- one batch element, channels-last (lane-dense)
    # o_ref: (1, HW, C)
    o_ref[...] = jnp.sum(x_ref[...] * w_ref[...], axis=1)


def conv3x3_fused_kernel(pa_ref, pb_ref, wa_ref, wb_ref, scale_ref, shift_ref, o_ref):
    # pa_ref: (tm, 9*C1) bf16 im2col patches of fm[i-1]
    # pb_ref: (tm, 9*C2) bf16 im2col patches of upsampled fm[i]
    # wa_ref: (9*C1, tn) bf16, wb_ref: (9*C2, tn) bf16  (split of the concat conv weight)
    # scale_ref / shift_ref: (1, tn) f32  -- folded eval-mode BatchNorm
    # o_ref: (tm, tn) f32
    acc = jnp.dot(pa_ref[...], wa_ref[...], preferred_element_type=jnp.float32)
    acc = acc + jnp.dot(pb_ref[...], wb_ref[...], preferred_element_type=jnp.float32)
    y = acc * scale_ref[...] + shift_ref[...]
    o_ref[...] = jnp.maximum(y, 0.0)


def conv3x3_fused_logit_kernel(pa_ref, pb_ref, wa_ref, wb_ref, scale_ref, shift_ref,
                               lw_ref, lb_ref, mask_ref):
    # Same as above, but the 1x1 logit conv (Cout=1) is folded into the epilogue as a
    # VPU dot-reduce over the Cout channels (avoids an N=1 MXU matmul + extra call).
    # lw_ref: (1, Cout) f32, lb_ref: (1, 1) f32, mask_ref: (tm, 1) f32
    acc = jnp.dot(pa_ref[...], wa_ref[...], preferred_element_type=jnp.float32)
    acc = acc + jnp.dot(pb_ref[...], wb_ref[...], preferred_element_type=jnp.float32)
    y = jnp.maximum(acc * scale_ref[...] + shift_ref[...], 0.0)
    mask_ref[...] = jnp.sum(y * lw_ref[...], axis=-1, keepdims=True) + lb_ref[...]


# ----------------------------------------------------------------------------
# Wrappers around pallas_call
# ----------------------------------------------------------------------------
_VMEM_LIMIT = 32 * 1024 * 1024


def attention_pool(x_ndhwc, attn_w):
    # x_ndhwc: (B, D, H, W, C);  attn_w: (1, 1, D, H, W)  ->  (B, H, W, C)  (NHWC)
    B, D, H, W, C = x_ndhwc.shape
    HW = H * W
    x2 = x_ndhwc.reshape(B, D, HW, C).astype(jnp.float32)
    # Softmax over depth computed ONCE in plain JAX (tiny), not per grid step.
    soft = jax.nn.softmax(attn_w.reshape(D, HW).astype(jnp.float32), axis=0)
    soft = soft.reshape(1, D, HW, 1)

    out = pl.pallas_call(
        attention_pool_kernel,
        out_shape=jax.ShapeDtypeStruct((B, HW, C), jnp.float32),
        grid=(B,),
        in_specs=[
            pl.BlockSpec((1, D, HW, 1), lambda b: (0, 0, 0, 0)),
            pl.BlockSpec((1, D, HW, C), lambda b: (b, 0, 0, 0)),
        ],
        out_specs=pl.BlockSpec((1, HW, C), lambda b: (b, 0, 0)),
        compiler_params=pltpu.CompilerParams(
            dimension_semantics=("parallel",),
            vmem_limit_bytes=_VMEM_LIMIT),
    )(soft, x2)
    return out.reshape(B, H, W, C)


def _im2col_3x3(x_nhwc):
    # (B, H, W, C) -> (B*H*W, 9*C) with (dy, dx, c) ordering (matches weight reshape).
    B, H, W, C = x_nhwc.shape
    xp = jnp.pad(x_nhwc, ((0, 0), (1, 1), (1, 1), (0, 0)))
    taps = [xp[:, dy:dy + H, dx:dx + W, :] for dy in range(3) for dx in range(3)]
    patches = jnp.stack(taps, axis=3)                    # (B, H, W, 9, C)
    return patches.reshape(B * H * W, 9 * C)


def _row_tile(m):
    # Prefer >=2 row tiles (feed both v7x TensorCores) with sublane-aligned tiles.
    for t in (512, 256, 128, 64, 32, 16, 8):
        if m % t == 0 and m // t >= 2:
            return t
    return m


def decoder_conv_stage(a_nhwc, b_up_nhwc, wa, wb, scale, shift, logit=None):
    # Fused: concat([a, b_up], ch) -> 3x3 conv (no bias) -> BN(eval) -> ReLU, NHWC.
    # If `logit` is given, the trailing 1x1 conv (Cout=1) is folded into the epilogue
    # and the mask (B, H, W, 1) is returned instead of the feature map.
    B, H, W, C1 = a_nhwc.shape
    C2 = b_up_nhwc.shape[-1]
    Cout = wa.shape[-1]
    M, Ka, Kb = B * H * W, 9 * C1, 9 * C2

    pa = _im2col_3x3(a_nhwc).astype(jnp.bfloat16)
    pb = _im2col_3x3(b_up_nhwc).astype(jnp.bfloat16)
    wa2 = wa.reshape(Ka, Cout).astype(jnp.bfloat16)
    wb2 = wb.reshape(Kb, Cout).astype(jnp.bfloat16)

    tm = _row_tile(M)
    tn = 128 if (logit is None and Cout % 128 == 0) else Cout
    grid = (M // tm, Cout // tn)

    in_specs = [
        pl.BlockSpec((tm, Ka), lambda m, n: (m, 0)),
        pl.BlockSpec((tm, Kb), lambda m, n: (m, 0)),
        pl.BlockSpec((Ka, tn), lambda m, n: (0, n)),
        pl.BlockSpec((Kb, tn), lambda m, n: (0, n)),
        pl.BlockSpec((1, tn), lambda m, n: (0, n)),
        pl.BlockSpec((1, tn), lambda m, n: (0, n)),
    ]
    cparams = pltpu.CompilerParams(
        dimension_semantics=("parallel", "parallel"),
        vmem_limit_bytes=_VMEM_LIMIT)
    flops = 2 * M * (Ka + Kb) * Cout
    in_bytes = 2 * (pa.size + pb.size + wa2.size + wb2.size) + 4 * 2 * Cout

    if logit is None:
        out = pl.pallas_call(
            conv3x3_fused_kernel,
            out_shape=jax.ShapeDtypeStruct((M, Cout), jnp.float32),
            grid=grid,
            in_specs=in_specs,
            out_specs=pl.BlockSpec((tm, tn), lambda m, n: (m, n)),
            compiler_params=cparams,
            cost_estimate=pl.CostEstimate(
                flops=flops, transcendentals=0,
                bytes_accessed=in_bytes + 4 * M * Cout),
        )(pa, pb, wa2, wb2, scale, shift)
        return out.reshape(B, H, W, Cout)

    assert Cout // tn == 1, "logit fusion needs all output channels in one tile"
    lw, lb = logit                                   # (1, Cout) f32, (1, 1) f32
    mask = pl.pallas_call(
        conv3x3_fused_logit_kernel,
        out_shape=jax.ShapeDtypeStruct((M, 1), jnp.float32),
        grid=grid,
        in_specs=in_specs + [
            pl.BlockSpec((1, Cout), lambda m, n: (0, 0)),
            pl.BlockSpec((1, 1), lambda m, n: (0, 0)),
        ],
        out_specs=pl.BlockSpec((tm, 1), lambda m, n: (m, 0)),
        compiler_params=cparams,
        cost_estimate=pl.CostEstimate(
            flops=flops + 2 * M * Cout, transcendentals=0,
            bytes_accessed=in_bytes + 4 * M),
    )(pa, pb, wa2, wb2, scale, shift, lw, lb)
    return mask.reshape(B, H, W, 1)


def upsample_bilinear_nhwc(x, scale):
    # Matches F.interpolate(mode='bilinear', align_corners=False) half-pixel centers.
    B, H, W, C = x.shape
    return jax.image.resize(x, (B, H * scale, W * scale, C), method="bilinear")


# ----------------------------------------------------------------------------
# Model (encoder stub + attention pooling + custom decoder)
# ----------------------------------------------------------------------------
CHANNELS = [64, 128, 256, 512]
DEPTH_FACTORS = [2, 4, 8, 16]
SPATIAL_FACTORS = [4, 8, 16, 32]


def encoder_stub(x, enc_params):
    # x: (B, 1, D, H, W) NCDHW input (as in the PyTorch module) -> NDHWC feature maps.
    B, _, D, H, W = x.shape
    feats = []
    for (C, df, sf, w, b) in enc_params:
        pooled = x[:, 0].reshape(B, D // df, df, H // sf, sf, W // sf, sf).mean(
            axis=(2, 4, 6))                                      # (B, Dd, Hd, Wd)
        feat = pooled[..., None] * w.reshape(1, 1, 1, 1, C) + b.reshape(1, 1, 1, 1, C)
        feats.append(feat)                                       # (B, Dd, Hd, Wd, C)
    return feats


def seg_model_forward(x, params):
    feat_maps = encoder_stub(x, params["encoder"])

    # pooler == 'attention'  (channels-last output feeds the NHWC decoder directly)
    fm = [attention_pool(f, params["attn"][i]) for i, f in enumerate(feat_maps)]

    # decoder3d2d == 'Custom'
    mask = None
    for i in range(len(fm) - 1, 0, -1):
        f_up = upsample_bilinear_nhwc(fm[i], 2)
        wa, wb, scale, shift = params["decoder_convs"][i - 1]
        if i == 1:
            # last stage: fuse the 1x1 logit conv into the epilogue
            mask = decoder_conv_stage(fm[0], f_up, wa, wb, scale, shift,
                                      logit=(params["logit_w"], params["logit_b"]))
        else:
            fm[i - 1] = decoder_conv_stage(fm[i - 1], f_up, wa, wb, scale, shift)

    mask = upsample_bilinear_nhwc(mask, 4)          # Decoder.up (scale_factor=4)
    return jnp.transpose(mask, (0, 3, 1, 2))        # NCHW at the model boundary only


def init_params(key, in_chans, size):
    keys = jax.random.split(key, 16)
    ki = iter(keys)

    enc = []
    for C, df, sf in zip(CHANNELS, DEPTH_FACTORS, SPATIAL_FACTORS):
        w = jax.random.normal(next(ki), (C,), jnp.float32) * 0.5
        b = jax.random.normal(next(ki), (C,), jnp.float32) * 0.1
        enc.append((C, df, sf, w, b))

    # AttentionPool parameters: torch.ones(1, 1, D, H, W)
    attn = []
    for df, sf in zip(DEPTH_FACTORS, SPATIAL_FACTORS):
        D_i, S_i = in_chans // df, size // sf
        attn.append(jnp.ones((1, 1, D_i, S_i, S_i), jnp.float32))

    # Decoder convs[i-1]: Conv2d(dims[i]+dims[i-1] -> dims[i-1], 3x3, no bias)+BN+ReLU.
    # The weight is stored pre-split along input channels: wa acts on fm[i-1] (first C1
    # channels of the torch concat), wb on the upsampled fm[i] (last C2 channels).
    eps = 1e-5
    dec_convs = []
    for i in range(1, len(CHANNELS)):
        c1, c2 = CHANNELS[i - 1], CHANNELS[i]
        cout = CHANNELS[i - 1]
        std = math.sqrt(2.0 / (9 * (c1 + c2)))
        wa = jax.random.normal(next(ki), (3, 3, c1, cout), jnp.float32) * std
        wb = jax.random.normal(next(ki), (3, 3, c2, cout), jnp.float32) * std
        # eval-mode BatchNorm with default gamma=1, beta=0, mean=0, var=1 (folded)
        scale = jnp.full((1, cout), 1.0 / math.sqrt(1.0 + eps), jnp.float32)
        shift = jnp.zeros((1, cout), jnp.float32)
        dec_convs.append((wa, wb, scale, shift))

    logit_w = jax.random.normal(next(ki), (1, CHANNELS[0]), jnp.float32) * math.sqrt(
        1.0 / CHANNELS[0])
    logit_b = jax.random.normal(next(ki), (1, 1), jnp.float32) * 0.01

    return {
        "encoder": enc,
        "attn": attn,
        "decoder_convs": dec_convs,
        "logit_w": logit_w,
        "logit_b": logit_b,
    }


if __name__ == "__main__":
    B, in_chans, size = 2, 16, 32          # x: (B, 1, in_chans, size, size), NCDHW
    key = jax.random.PRNGKey(0)
    k_params, k_x = jax.random.split(key)

    params = init_params(k_params, in_chans, size)
    x = jax.random.normal(k_x, (B, 1, in_chans, size, size), jnp.float32)

    out = seg_model_forward(x, params)
    out = jax.block_until_ready(out)

    assert out.shape == (B, 1, size, size), out.shape
    assert jnp.all(jnp.isfinite(out))
    print("KERNEL_OK")
</pallas_src>

<mosaic_0001>
module attributes {stable_mosaic.version = 11 : i64} {
  func.func @attention_pool_kernel(%arg0: i32, %arg1: memref<1x8x64x1xf32, #tpu.memory_space<vmem>>, %arg2: memref<1x8x64x64xf32, #tpu.memory_space<vmem>>, %arg3: memref<1x64x64xf32, #tpu.memory_space<vmem>>) attributes {dimension_semantics = [#tpu.dimension_semantics<parallel>], iteration_bounds = array<i64: 2>, scalar_prefetch = 0 : i64, scratch_operands = 0 : i64, tpu.core_type = #tpu.core_type<tc>, window_params = [{pipeline_mode = #tpu.pipeline_mode<synchronous>, transform_indices = @transform_0, window_bounds = array<i64: 1, 8, 64, 1>}, {transform_indices = @transform_1, window_bounds = array<i64: 1, 8, 64, 64>}, {transform_indices = @transform_2, window_bounds = array<i64: 1, 64, 64>}]} {
    %c0 = arith.constant 0 : index
    %c0_0 = arith.constant 0 : index
    %c0_1 = arith.constant 0 : index
    %c0_2 = arith.constant 0 : index
    %0 = vector.load %arg2[%c0, %c0_0, %c0_1, %c0_2] : memref<1x8x64x64xf32, #tpu.memory_space<vmem>>, vector<1x8x64x64xf32>
    %c0_3 = arith.constant 0 : index
    %c0_4 = arith.constant 0 : index
    %c0_5 = arith.constant 0 : index
    %c0_6 = arith.constant 0 : index
    %1 = vector.load %arg1[%c0_3, %c0_4, %c0_5, %c0_6] : memref<1x8x64x1xf32, #tpu.memory_space<vmem>>, vector<1x8x64x1xf32>
    %2 = vector.broadcast %1 : vector<1x8x64x1xf32> to vector<1x8x64x64xf32>
    %3 = arith.mulf %0, %2 : vector<1x8x64x64xf32>
    %cst = arith.constant dense<0.000000e+00> : vector<1x64x64xf32>
    %4 = vector.multi_reduction <add>, %3, %cst [1] : vector<1x8x64x64xf32> to vector<1x64x64xf32>
    %c0_7 = arith.constant 0 : index
    %c0_8 = arith.constant 0 : index
    %c0_9 = arith.constant 0 : index
    %5 = vector.load %arg3[%c0_7, %c0_8, %c0_9] : memref<1x64x64xf32, #tpu.memory_space<vmem>>, vector<1x64x64xf32>
    tpu.vector_store %arg3[%c0_7, %c0_8, %c0_9], %4 {strides = array<i32>} : memref<1x64x64xf32, #tpu.memory_space<vmem>>, vector<1x64x64xf32>,
    return
  }
  func.func @transform_0(%arg0: i32) -> (i32, i32, i32, i32) {
    %c0_i32 = arith.constant 0 : i32
    %c0_i32_0 = arith.constant 0 : i32
    %c0_i32_1 = arith.constant 0 : i32
    %c0_i32_2 = arith.constant 0 : i32
    %c0_i32_3 = arith.constant 0 : i32
    return %c0_i32, %c0_i32_0, %c0_i32_1, %c0_i32_2 : i32, i32, i32, i32
  }
  func.func @transform_1(%arg0: i32) -> (i32, i32, i32, i32) {
    %c0_i32 = arith.constant 0 : i32
    %c0_i32_0 = arith.constant 0 : i32
    %c0_i32_1 = arith.constant 0 : i32
    %c0_i32_2 = arith.constant 0 : i32
    return %arg0, %c0_i32, %c0_i32_0, %c0_i32_1 : i32, i32, i32, i32
  }
  func.func @transform_2(%arg0: i32) -> (i32, i32, i32) {
    %c0_i32 = arith.constant 0 : i32
    %c0_i32_0 = arith.constant 0 : i32
    %c0_i32_1 = arith.constant 0 : i32
    return %arg0, %c0_i32, %c0_i32_0 : i32, i32, i32
  }
}

</mosaic_0001>

<llo_original>
// kernel: tpu_custom_call.1
$region0: #{tpu_custom_call.1}
  #allocation0 [shape = 'u32[]', space=smem, size = 0x4, offset = 0x4, fixed_abs, tag = 'smem constant byte address 0x4 - core index']
  #allocation1 [shape = 'u32[144,128]{1,0:T(1,128)}', space=vmem, size = 0x12000, scoped, tag = 'internal scratch']
  %s0 = inlined_call_operand.vmem [shape: f32[1,8,64,1], index: 0, kind: input, shape index: {}]
  %s1 = inlined_call_operand.hbm [shape: f32[2,8,64,64], index: 1, kind: input, shape index: {}]
  %s2 = inlined_call_operand.hbm [shape: f32[2,64,64], index: 2, kind: output, shape index: {}]
  %s3 = sld [smem:[#allocation0]]
  $region45: #{tpu_custom_call.1} parent=0
    _
  %s5 = ssub.s32 1, %s3
  %s6 = scalar_select 0, %s5, %s3
  $region1: #{tpu_custom_call.1} parent=0
    #allocation2 [shape = 'u8[524288]{0}', space=vmem, size = 0x80000, scoped, tag = 'input window, operand 1']
    #allocation3 [shape = 's32[2]{0}', space=sflag, size = 0x8, scoped, tag = 'scoped memory for tpu_custom_call.1']
    #allocation4 [shape = 's32[2]{0}', space=sflag, size = 0x8, scoped, tag = 'scoped memory for tpu_custom_call.1']
    #allocation5 [shape = 'u8[65536]{0}', space=vmem, size = 0x10000, scoped, tag = 'output window, operand 0']
    %7 = vsyncpa [#allocation3], 0
    %s8 = scalar_lea.sflag [#allocation3], 1
    %9 = vsyncpa %s8, 0
    %10 = vsyncpa [#allocation4], 0
    %s11 = scalar_lea.sflag [#allocation4], 1
    %12 = vsyncpa %s11, 0
    loop: start=0, step=1, limit=4
    $region2: #{tpu_custom_call.1} parent=1 // loop_pre_header
      _
    $region3: #{tpu_custom_call.1} parent=1 // loop_header
      %s14 = sphi 0, %s18
      %p15 = scmp.ge.s32.totalorder %s14, 4
      %s22 = sphi 0, %s22
      %s24 = sphi 0, %s22
      %s25 = sphi 0, %s24
      %s39 = sphi 0, %s25
      %s45 = sphi 0, %s47
      %s48 = sphi 0, %s45
      %s49 = sphi 0, %s48
      %s65 = sphi 0, %s49
      %s71 = sphi 0, %s73
      %s74 = sphi 0, %s71
      %s75 = sphi 0, %s74
      %s91 = sphi 0, %s75
    $region4: #{tpu_custom_call.1} parent=1 // loop_header_branch
      %17 = sbr.rel (%p15) target = $region8
    $region5: #{tpu_custom_call.1} parent=1 // loop_body
      %s19 = ssub.s32 %s14, 1
      %s20 = ssub.s32 %s14, 2
      %s21 = sadd.s32 %s14, 1
      %s23 = sadd.s32 %s22, 1
      %p26 = scmp.eq.s32.totalorder %s14, 1
      %p27 = scmp.ne.s32.totalorder %s22, %s24
      %p28 = scmp.eq.s32.totalorder %s14, 0
      %p29 = por %p27, %p28
      %p30 = scmp.ne.s32.totalorder %s22, %s24
      %p31 = scmp.eq.s32.totalorder %s19, 1
      %p32 = por %p30, %p31
      %p33 = scmp.ne.s32.totalorder %s24, %s25
      %p34 = scmp.eq.s32.totalorder %s19, 0
      %p35 = por %p33, %p34
      %p36 = scmp.ne.s32.totalorder %s24, %s25
      %p37 = scmp.eq.s32.totalorder %s20, 1
      %p38 = por %p36, %p37
      %p40 = scmp.ne.s32.totalorder %s25, %s39
      %p41 = scmp.eq.s32.totalorder %s20, 0
      %p42 = por %p40, %p41
      %s43 = ssub.s32 %s14, %s21
      %p44 = scmp.eq.s32.totalorder %s43, 0
      %s46 = sadd.s32 %s45, 1
      %s47 = scalar_select %p44, %s45, %s46
      %p50 = pneg %p44
      %p51 = scmp.eq.s32.totalorder %s14, 1
      %p52 = por %p50, %p51
      %p53 = scmp.ne.s32.totalorder %s45, %s48
      %p54 = scmp.eq.s32.totalorder %s14, 0
      %p55 = por %p53, %p54
      %p56 = scmp.ne.s32.totalorder %s45, %s48
      %p57 = scmp.eq.s32.totalorder %s19, 1
      %p58 = por %p56, %p57
      %p59 = scmp.ne.s32.totalorder %s48, %s49
      %p60 = scmp.eq.s32.totalorder %s19, 0
      %p61 = por %p59, %p60
      %p62 = scmp.ne.s32.totalorder %s48, %s49
      %p63 = scmp.eq.s32.totalorder %s20, 1
      %p64 = por %p62, %p63
      %p66 = scmp.ne.s32.totalorder %s49, %s65
      %p67 = scmp.eq.s32.totalorder %s20, 0
      %p68 = por %p66, %p67
      %s69 = ssub.s32 %s14, %s21
      %p70 = scmp.eq.s32.totalorder %s69, 0
      %s72 = sadd.s32 %s71, 1
      %s73 = scalar_select %p70, %s71, %s72
      %p76 = pneg %p70
      %p77 = scmp.eq.s32.totalorder %s14, 1
      %p78 = por %p76, %p77
      %p79 = scmp.ne.s32.totalorder %s71, %s74
      %p80 = scmp.eq.s32.totalorder %s14, 0
      %p81 = por %p79, %p80
      %p82 = scmp.ne.s32.totalorder %s71, %s74
      %p83 = scmp.eq.s32.totalorder %s19, 1
      %p84 = por %p82, %p83
      %p85 = scmp.ne.s32.totalorder %s74, %s75
      %p86 = scmp.eq.s32.totalorder %s19, 0
      %p87 = por %p85, %p86
      %p88 = scmp.ne.s32.totalorder %s74, %s75
      %p89 = scmp.eq.s32.totalorder %s20, 1
      %p90 = por %p88, %p89
      %p92 = scmp.ne.s32.totalorder %s75, %s91
      %p93 = scmp.eq.s32.totalorder %s20, 0
      %p94 = por %p92, %p93
      %p95 = scmp.le.s32.totalorder 1, %s14
      %p96 = scmp.lt.s32.totalorder %s14, 3
      %p97 = pnand %p95, %p96
      %p98 = pneg %p97
      // Predicated region
      $region9: #{tpu_custom_call.1} parent=5 // pred_check
        _
      $region10: #{tpu_custom_call.1} parent=5 // pred_check_branch
        %100 = sbr.rel (%p97) target = $region12
      $region11: #{tpu_custom_call.1} parent=5 // pred_region
        %s101 = ssub.s32 %s14, 1
        // Predicated region
        $region13: #{tpu_custom_call.1} parent=11 // pred_check
          %p102 = pneg %p35
        $region14: #{tpu_custom_call.1} parent=11 // pred_check_branch
          %104 = sbr.rel (%p102) target = $region16
        $region15: #{tpu_custom_call.1} parent=11 // pred_region
          _
        $region16: #{tpu_custom_call.1} parent=11 // pred_fallthru
          _
      $region12: #{tpu_custom_call.1} parent=5 // pred_fallthru
        _
      %p105 = scmp.lt.s32.totalorder %s14, 2
      // Predicated region
      $region17: #{tpu_custom_call.1} parent=5 // pred_check
        %p106 = pneg %p105
      $region18: #{tpu_custom_call.1} parent=5 // pred_check_branch
        %108 = sbr.rel (%p106) target = $region20
      $region19: #{tpu_custom_call.1} parent=5 // pred_region
        // Predicated region
        $region21: #{tpu_custom_call.1} parent=19 // pred_check
          %p109 = pneg %p55
        $region22: #{tpu_custom_call.1} parent=19 // pred_check_branch
          %111 = sbr.rel (%p109) target = $region24
        $region23: #{tpu_custom_call.1} parent=19 // pred_region
          %s112 = sand.u32 %s45, 1
          %s113 = scalar_lea.sflag [#allocation3], %s112
          %s114 = sand.u32 %s45, 1
          %s115 = smul.addr %s114, 512
          %s116 = scalar_lea.vmem [#allocation2], %s115
          %s118 = ssub.s32 8192, 8192
          %119 = vsyncadd %s113, %s118
          %s120 = smul.addr %s14, 64
          %s121 = smul.addr %s120, 128
          %s122 = scalar_lea.hbm %s1, %s121
          %s123 = sshll.u32 %s116, 4
          %s124 = int_to_ptr.vmem [resolvable:$true] %s123
          %129 = dma.hbm_to_vmem [thread:$0]  %s122, 8192, %s124, %s113, 128, 128, 8
        $region24: #{tpu_custom_call.1} parent=19 // pred_fallthru
          _
      $region20: #{tpu_custom_call.1} parent=5 // pred_fallthru
        _
      %p130 = scmp.le.s32.totalorder 1, %s14
      %p131 = scmp.lt.s32.totalorder %s14, 3
      %p132 = pnand %p130, %p131
      %p133 = pneg %p132
      // Predicated region
      $region25: #{tpu_custom_call.1} parent=5 // pred_check
        _
      $region26: #{tpu_custom_call.1} parent=5 // pred_check_branch
        %135 = sbr.rel (%p132) target = $region28
      $region27: #{tpu_custom_call.1} parent=5 // pred_region
        %s136 = ssub.s32 %s14, 1
        %s137 = sand.u32 %s48, 1
        %s138 = scalar_lea.sflag [#allocation3], %s137
        %s139 = sand.u32 %s48, 1
        %s140 = smul.addr %s139, 512
        %s141 = scalar_lea.vmem [#allocation2], %s140
        // Predicated region
        $region29: #{tpu_custom_call.1} parent=27 // pred_check
          %p142 = pneg %p61
        $region30: #{tpu_custom_call.1} parent=27 // pred_check_branch
          %144 = sbr.rel (%p142) target = $region32
        $region31: #{tpu_custom_call.1} parent=27 // pred_region
          %145 = dma.done %s138, 8192
        $region32: #{tpu_custom_call.1} parent=27 // pred_fallthru
          _
        %p146 = pneg %p35
        %p147 = pneg %p32
        %s148 = sand.u32 %s48, 1
        %s149 = scalar_lea.sflag [#allocation3], %s148
        %s150 = sand.u32 %s48, 1
        %s151 = smul.addr %s150, 512
        %s152 = scalar_lea.vmem [#allocation2], %s151
        %p153 = pneg %p61
        %p154 = pneg %p58
        %p155 = pneg %p87
        %p156 = pneg %p84
        %s157 = sand.u32 %s74, 1
        %s158 = scalar_lea.sflag [#allocation4], %s157
        %s159 = sand.u32 %s74, 1
        %s160 = smul.addr %s159, 64
        %s161 = scalar_lea.vmem [#allocation5], %s160
        %v162 = vld [vmem:[%s141] sm:$0xff]
        %v163 = vld [vmem:[%s141 + $0x8] sm:$0xff]
        %v164 = vld [vmem:[%s141 + $0x10] sm:$0xff]
        %v165 = vld [vmem:[%s141 + $0x18] sm:$0xff]
        %v166 = vld [vmem:[%s141 + $0x20] sm:$0xff]
        %v167 = vld [vmem:[%s141 + $0x28] sm:$0xff]
        %v168 = vld [vmem:[%s141 + $0x30] sm:$0xff]
        %v169 = vld [vmem:[%s141 + $0x38] sm:$0xff]
        %v170 = vld [vmem:[%s141 + $0x40] sm:$0xff]
        %v171 = vld [vmem:[%s141 + $0x48] sm:$0xff]
        %v172 = vld [vmem:[%s141 + $0x50] sm:$0xff]
        %v173 = vld [vmem:[%s141 + $0x58] sm:$0xff]
        %v174 = vld [vmem:[%s141 + $0x60] sm:$0xff]
        %v175 = vld [vmem:[%s141 + $0x68] sm:$0xff]
        %v176 = vld [vmem:[%s141 + $0x70] sm:$0xff]
        %v177 = vld [vmem:[%s141 + $0x78] sm:$0xff]
        %v178 = vld [vmem:[%s141 + $0x80] sm:$0xff]
        %v179 = vld [vmem:[%s141 + $0x88] sm:$0xff]
        %v180 = vld [vmem:[%s141 + $0x90] sm:$0xff]
        %v181 = vld [vmem:[%s141 + $0x98] sm:$0xff]
        %v182 = vld [vmem:[%s141 + $0xa0] sm:$0xff]
        %v183 = vld [vmem:[%s141 + $0xa8] sm:$0xff]
        %v184 = vld [vmem:[%s141 + $0xb0] sm:$0xff]
        %v185 = vld [vmem:[%s141 + $0xb8] sm:$0xff]
        %v186 = vld [vmem:[%s141 + $0xc0] sm:$0xff]
        %v187 = vld [vmem:[%s141 + $0xc8] sm:$0xff]
        %v188 = vld [vmem:[%s141 + $0xd0] sm:$0xff]
        %v189 = vld [vmem:[%s141 + $0xd8] sm:$0xff]
        %v190 = vld [vmem:[%s141 + $0xe0] sm:$0xff]
        %v191 = vld [vmem:[%s141 + $0xe8] sm:$0xff]
        %v192 = vld [vmem:[%s141 + $0xf0] sm:$0xff]
        %v193 = vld [vmem:[%s141 + $0xf8] sm:$0xff]
        %v194 = vld [vmem:[%s141 + $0x100] sm:$0xff]
        %v195 = vld [vmem:[%s141 + $0x108] sm:$0xff]
        %v196 = vld [vmem:[%s141 + $0x110] sm:$0xff]
        %v197 = vld [vmem:[%s141 + $0x118] sm:$0xff]
        %v198 = vld [vmem:[%s141 + $0x120] sm:$0xff]
        %v199 = vld [vmem:[%s141 + $0x128] sm:$0xff]
        %v200 = vld [vmem:[%s141 + $0x130] sm:$0xff]
        %v201 = vld [vmem:[%s141 + $0x138] sm:$0xff]
        %v202 = vld [vmem:[%s141 + $0x140] sm:$0xff]
        %v203 = vld [vmem:[%s141 + $0x148] sm:$0xff]
        %v204 = vld [vmem:[%s141 + $0x150] sm:$0xff]
        %v205 = vld [vmem:[%s141 + $0x158] sm:$0xff]
        %v206 = vld [vmem:[%s141 + $0x160] sm:$0xff]
        %v207 = vld [vmem:[%s141 + $0x168] sm:$0xff]
        %v208 = vld [vmem:[%s141 + $0x170] sm:$0xff]
        %v209 = vld [vmem:[%s141 + $0x178] sm:$0xff]
        %v210 = vld [vmem:[%s141 + $0x180] sm:$0xff]
        %v211 = vld [vmem:[%s141 + $0x188] sm:$0xff]
        %v212 = vld [vmem:[%s141 + $0x190] sm:$0xff]
        %v213 = vld [vmem:[%s141 + $0x198] sm:$0xff]
        %v214 = vld [vmem:[%s141 + $0x1a0] sm:$0xff]
        %v215 = vld [vmem:[%s141 + $0x1a8] sm:$0xff]
        %v216 = vld [vmem:[%s141 + $0x1b0] sm:$0xff]
        %v217 = vld [vmem:[%s141 + $0x1b8] sm:$0xff]
        %v218 = vld [vmem:[%s141 + $0x1c0] sm:$0xff]
        %v219 = vld [vmem:[%s141 + $0x1c8] sm:$0xff]
        %v220 = vld [vmem:[%s141 + $0x1d0] sm:$0xff]
        %v221 = vld [vmem:[%s141 + $0x1d8] sm:$0xff]
        %v222 = vld [vmem:[%s141 + $0x1e0] sm:$0xff]
        %v223 = vld [vmem:[%s141 + $0x1e8] sm:$0xff]
        %v224 = vld [vmem:[%s141 + $0x1f0] sm:$0xff]
        %v225 = vld [vmem:[%s141 + $0x1f8] sm:$0xff]
        %v226 = vld [vmem:[%s0] sm:$0xff]
        %v227 = vld [vmem:[%s0 + $0x8] sm:$0xff]
        %v228 = vld [vmem:[%s0 + $0x10] sm:$0xff]
        %v229 = vld [vmem:[%s0 + $0x18] sm:$0xff]
        %v230 = vld [vmem:[%s0 + $0x20] sm:$0xff]
        %v231 = vld [vmem:[%s0 + $0x28] sm:$0xff]
        %v232 = vld [vmem:[%s0 + $0x30] sm:$0xff]
        %v233 = vld [vmem:[%s0 + $0x38] sm:$0xff]
        %v234 = vld [vmem:[%s0 + $0x40] sm:$0xff]
        %v235 = vld [vmem:[%s0 + $0x48] sm:$0xff]
        %v236 = vld [vmem:[%s0 + $0x50] sm:$0xff]
        %v237 = vld [vmem:[%s0 + $0x58] sm:$0xff]
        %v238 = vld [vmem:[%s0 + $0x60] sm:$0xff]
        %v239 = vld [vmem:[%s0 + $0x68] sm:$0xff]
        %v240 = vld [vmem:[%s0 + $0x70] sm:$0xff]
        %v241 = vld [vmem:[%s0 + $0x78] sm:$0xff]
        %v242 = vld [vmem:[%s0 + $0x80] sm:$0xff]
        %v243 = vld [vmem:[%s0 + $0x88] sm:$0xff]
        %v244 = vld [vmem:[%s0 + $0x90] sm:$0xff]
        %v245 = vld [vmem:[%s0 + $0x98] sm:$0xff]
        %v246 = vld [vmem:[%s0 + $0xa0] sm:$0xff]
        %v247 = vld [vmem:[%s0 + $0xa8] sm:$0xff]
        %v248 = vld [vmem:[%s0 + $0xb0] sm:$0xff]
        %v249 = vld [vmem:[%s0 + $0xb8] sm:$0xff]
        %v250 = vld [vmem:[%s0 + $0xc0] sm:$0xff]
        %v251 = vld [vmem:[%s0 + $0xc8] sm:$0xff]
        %v252 = vld [vmem:[%s0 + $0xd0] sm:$0xff]
        %v253 = vld [vmem:[%s0 + $0xd8] sm:$0xff]
        %v254 = vld [vmem:[%s0 + $0xe0] sm:$0xff]
        %v255 = vld [vmem:[%s0 + $0xe8] sm:$0xff]
        %v256 = vld [vmem:[%s0 + $0xf0] sm:$0xff]
        %v257 = vld [vmem:[%s0 + $0xf8] sm:$0xff]
        %v258 = vld [vmem:[%s0 + $0x100] sm:$0xff]
        %v259 = vld [vmem:[%s0 + $0x108] sm:$0xff]
        %v260 = vld [vmem:[%s0 + $0x110] sm:$0xff]
        %v261 = vld [vmem:[%s0 + $0x118] sm:$0xff]
        %v262 = vld [vmem:[%s0 + $0x120] sm:$0xff]
        %v263 = vld [vmem:[%s0 + $0x128] sm:$0xff]
        %v264 = vld [vmem:[%s0 + $0x130] sm:$0xff]
        %v265 = vld [vmem:[%s0 + $0x138] sm:$0xff]
        %v266 = vld [vmem:[%s0 + $0x140] sm:$0xff]
        %v267 = vld [vmem:[%s0 + $0x148] sm:$0xff]
        %v268 = vld [vmem:[%s0 + $0x150] sm:$0xff]
        %v269 = vld [vmem:[%s0 + $0x158] sm:$0xff]
        %v270 = vld [vmem:[%s0 + $0x160] sm:$0xff]
        %v271 = vld [vmem:[%s0 + $0x168] sm:$0xff]
        %v272 = vld [vmem:[%s0 + $0x170] sm:$0xff]
        %v273 = vld [vmem:[%s0 + $0x178] sm:$0xff]
        %v274 = vld [vmem:[%s0 + $0x180] sm:$0xff]
        %v275 = vld [vmem:[%s0 + $0x188] sm:$0xff]
        %v276 = vld [vmem:[%s0 + $0x190] sm:$0xff]
        %v277 = vld [vmem:[%s0 + $0x198] sm:$0xff]
        %v278 = vld [vmem:[%s0 + $0x1a0] sm:$0xff]
        %v279 = vld [vmem:[%s0 + $0x1a8] sm:$0xff]
        %v280 = vld [vmem:[%s0 + $0x1b0] sm:$0xff]
        %v281 = vld [vmem:[%s0 + $0x1b8] sm:$0xff]
        %v282 = vld [vmem:[%s0 + $0x1c0] sm:$0xff]
        %v283 = vld [vmem:[%s0 + $0x1c8] sm:$0xff]
        %v284 = vld [vmem:[%s0 + $0x1d0] sm:$0xff]
        %v285 = vld [vmem:[%s0 + $0x1d8] sm:$0xff]
        %v286 = vld [vmem:[%s0 + $0x1e0] sm:$0xff]
        %v287 = vld [vmem:[%s0 + $0x1e8] sm:$0xff]
        %v288 = vld [vmem:[%s0 + $0x1f0] sm:$0xff]
        %v289 = vld [vmem:[%s0 + $0x1f8] sm:$0xff]
        %291 = vset.pattern.permute.xlu0 0
        %292 = vperm.xlu0 %291, %v226
        %v293 = vpop.permute.xlu0 %292
        %296 = vset.pattern.permute.xlu0 0
        %297 = vperm.xlu0 %296, %v227
        %v298 = vpop.permute.xlu0 %297
        %301 = vset.pattern.permute.xlu0 0
        %302 = vperm.xlu0 %301, %v228
        %v303 = vpop.permute.xlu0 %302
        %306 = vset.pattern.permute.xlu0 0
        %307 = vperm.xlu0 %306, %v229
        %v308 = vpop.permute.xlu0 %307
        %311 = vset.pattern.permute.xlu0 0
        %312 = vperm.xlu0 %311, %v230
        %v313 = vpop.permute.xlu0 %312
        %316 = vset.pattern.permute.xlu0 0
        %317 = vperm.xlu0 %316, %v231
        %v318 = vpop.permute.xlu0 %317
        %321 = vset.pattern.permute.xlu0 0
        %322 = vperm.xlu0 %321, %v232
        %v323 = vpop.permute.xlu0 %322
        %326 = vset.pattern.permute.xlu0 0
        %327 = vperm.xlu0 %326, %v233
        %v328 = vpop.permute.xlu0 %327
        %331 = vset.pattern.permute.xlu0 0
        %332 = vperm.xlu0 %331, %v234
        %v333 = vpop.permute.xlu0 %332
        %336 = vset.pattern.permute.xlu0 0
        %337 = vperm.xlu0 %336, %v235
        %v338 = vpop.permute.xlu0 %337
        %341 = vset.pattern.permute.xlu0 0
        %342 = vperm.xlu0 %341, %v236
        %v343 = vpop.permute.xlu0 %342
        %346 = vset.pattern.permute.xlu0 0
        %347 = vperm.xlu0 %346, %v237
        %v348 = vpop.permute.xlu0 %347
        %351 = vset.pattern.permute.xlu0 0
        %352 = vperm.xlu0 %351, %v238
        %v353 = vpop.permute.xlu0 %352
        %356 = vset.pattern.permute.xlu0 0
        %357 = vperm.xlu0 %356, %v239
        %v358 = vpop.permute.xlu0 %357
        %361 = vset.pattern.permute.xlu0 0
        %362 = vperm.xlu0 %361, %v240
        %v363 = vpop.permute.xlu0 %362
        %366 = vset.pattern.permute.xlu0 0
        %367 = vperm.xlu0 %366, %v241
        %v368 = vpop.permute.xlu0 %367
        %371 = vset.pattern.permute.xlu0 0
        %372 = vperm.xlu0 %371, %v242
        %v373 = vpop.permute.xlu0 %372
        %376 = vset.pattern.permute.xlu0 0
        %377 = vperm.xlu0 %376, %v243
        %v378 = vpop.permute.xlu0 %377
        %381 = vset.pattern.permute.xlu0 0
        %382 = vperm.xlu0 %381, %v244
        %v383 = vpop.permute.xlu0 %382
        %386 = vset.pattern.permute.xlu0 0
        %387 = vperm.xlu0 %386, %v245
        %v388 = vpop.permute.xlu0 %387
        %391 = vset.pattern.permute.xlu0 0
        %392 = vperm.xlu0 %391, %v246
        %v393 = vpop.permute.xlu0 %392
        %396 = vset.pattern.permute.xlu0 0
        %397 = vperm.xlu0 %396, %v247
        %v398 = vpop.permute.xlu0 %397
        %401 = vset.pattern.permute.xlu0 0
        %402 = vperm.xlu0 %401, %v248
        %v403 = vpop.permute.xlu0 %402
        %406 = vset.pattern.permute.xlu0 0
        %407 = vperm.xlu0 %406, %v249
        %v408 = vpop.permute.xlu0 %407
        %411 = vset.pattern.permute.xlu0 0
        %412 = vperm.xlu0 %411, %v250
        %v413 = vpop.permute.xlu0 %412
        %416 = vset.pattern.permute.xlu0 0
        %417 = vperm.xlu0 %416, %v251
        %v418 = vpop.permute.xlu0 %417
        %421 = vset.pattern.permute.xlu0 0
        %422 = vperm.xlu0 %421, %v252
        %v423 = vpop.permute.xlu0 %422
        %426 = vset.pattern.permute.xlu0 0
        %427 = vperm.xlu0 %426, %v253
        %v428 = vpop.permute.xlu0 %427
        %431 = vset.pattern.permute.xlu0 0
        %432 = vperm.xlu0 %431, %v254
        %v433 = vpop.permute.xlu0 %432
        %436 = vset.pattern.permute.xlu0 0
        %437 = vperm.xlu0 %436, %v255
        %v438 = vpop.permute.xlu0 %437
        %441 = vset.pattern.permute.xlu0 0
        %442 = vperm.xlu0 %441, %v256
        %v443 = vpop.permute.xlu0 %442
        %446 = vset.pattern.permute.xlu0 0
        %447 = vperm.xlu0 %446, %v257
        %v448 = vpop.permute.xlu0 %447
        %451 = vset.pattern.permute.xlu0 0
        %452 = vperm.xlu0 %451, %v258
        %v453 = vpop.permute.xlu0 %452
        %456 = vset.pattern.permute.xlu0 0
        %457 = vperm.xlu0 %456, %v259
        %v458 = vpop.permute.xlu0 %457
        %461 = vset.pattern.permute.xlu0 0
        %462 = vperm.xlu0 %461, %v260
        %v463 = vpop.permute.xlu0 %462
        %466 = vset.pattern.permute.xlu0 0
        %467 = vperm.xlu0 %466, %v261
        %v468 = vpop.permute.xlu0 %467
        %471 = vset.pattern.permute.xlu0 0
        %472 = vperm.xlu0 %471, %v262
        %v473 = vpop.permute.xlu0 %472
        %476 = vset.pattern.permute.xlu0 0
        %477 = vperm.xlu0 %476, %v263
        %v478 = vpop.permute.xlu0 %477
        %481 = vset.pattern.permute.xlu0 0
        %482 = vperm.xlu0 %481, %v264
        %v483 = vpop.permute.xlu0 %482
        %486 = vset.pattern.permute.xlu0 0
        %487 = vperm.xlu0 %486, %v265
        %v488 = vpop.permute.xlu0 %487
        %491 = vset.pattern.permute.xlu0 0
        %492 = vperm.xlu0 %491, %v266
        %v493 = vpop.permute.xlu0 %492
        %496 = vset.pattern.permute.xlu0 0
        %497 = vperm.xlu0 %496, %v267
        %v498 = vpop.permute.xlu0 %497
        %501 = vset.pattern.permute.xlu0 0
        %502 = vperm.xlu0 %501, %v268
        %v503 = vpop.permute.xlu0 %502
        %506 = vset.pattern.permute.xlu0 0
        %507 = vperm.xlu0 %506, %v269
        %v508 = vpop.permute.xlu0 %507
        %511 = vset.pattern.permute.xlu0 0
        %512 = vperm.xlu0 %511, %v270
        %v513 = vpop.permute.xlu0 %512
        %516 = vset.pattern.permute.xlu0 0
        %517 = vperm.xlu0 %516, %v271
        %v518 = vpop.permute.xlu0 %517
        %521 = vset.pattern.permute.xlu0 0
        %522 = vperm.xlu0 %521, %v272
        %v523 = vpop.permute.xlu0 %522
        %526 = vset.pattern.permute.xlu0 0
        %527 = vperm.xlu0 %526, %v273
        %v528 = vpop.permute.xlu0 %527
        %531 = vset.pattern.permute.xlu0 0
        %532 = vperm.xlu0 %531, %v274
        %v533 = vpop.permute.xlu0 %532
        %536 = vset.pattern.permute.xlu0 0
        %537 = vperm.xlu0 %536, %v275
        %v538 = vpop.permute.xlu0 %537
        %541 = vset.pattern.permute.xlu0 0
        %542 = vperm.xlu0 %541, %v276
        %v543 = vpop.permute.xlu0 %542
        %546 = vset.pattern.permute.xlu0 0
        %547 = vperm.xlu0 %546, %v277
        %v548 = vpop.permute.xlu0 %547
        %551 = vset.pattern.permute.xlu0 0
        %552 = vperm.xlu0 %551, %v278
        %v553 = vpop.permute.xlu0 %552
        %556 = vset.pattern.permute.xlu0 0
        %557 = vperm.xlu0 %556, %v279
        %v558 = vpop.permute.xlu0 %557
        %561 = vset.pattern.permute.xlu0 0
        %562 = vperm.xlu0 %561, %v280
        %v563 = vpop.permute.xlu0 %562
        %566 = vset.pattern.permute.xlu0 0
        %567 = vperm.xlu0 %566, %v281
        %v568 = vpop.permute.xlu0 %567
        %571 = vset.pattern.permute.xlu0 0
        %572 = vperm.xlu0 %571, %v282
        %v573 = vpop.permute.xlu0 %572
        %576 = vset.pattern.permute.xlu0 0
        %577 = vperm.xlu0 %576, %v283
        %v578 = vpop.permute.xlu0 %577
        %581 = vset.pattern.permute.xlu0 0
        %582 = vperm.xlu0 %581, %v284
        %v583 = vpop.permute.xlu0 %582
        %586 = vset.pattern.permute.xlu0 0
        %587 = vperm.xlu0 %586, %v285
        %v588 = vpop.permute.xlu0 %587
        %591 = vset.pattern.permute.xlu0 0
        %592 = vperm.xlu0 %591, %v286
        %v593 = vpop.permute.xlu0 %592
        %596 = vset.pattern.permute.xlu0 0
        %597 = vperm.xlu0 %596, %v287
        %v598 = vpop.permute.xlu0 %597
        %601 = vset.pattern.permute.xlu0 0
        %602 = vperm.xlu0 %601, %v288
        %v603 = vpop.permute.xlu0 %602
        %606 = vset.pattern.permute.xlu0 0
        %607 = vperm.xlu0 %606, %v289
        %v608 = vpop.permute.xlu0 %607
        %v610 = vmul.f32 %v162, %v293
        %v611 = vmul.f32 %v163, %v298
        %v612 = vmul.f32 %v164, %v303
        %v613 = vmul.f32 %v165, %v308
        %v614 = vmul.f32 %v166, %v313
        %v615 = vmul.f32 %v167, %v318
        %v616 = vmul.f32 %v168, %v323
        %v617 = vmul.f32 %v169, %v328
        %v618 = vmul.f32 %v170, %v333
        %v619 = vmul.f32 %v171, %v338
        %v620 = vmul.f32 %v172, %v343
        %v621 = vmul.f32 %v173, %v348
        %v622 = vmul.f32 %v174, %v353
        %v623 = vmul.f32 %v175, %v358
        %v624 = vmul.f32 %v176, %v363
        %v625 = vmul.f32 %v177, %v368
        %v626 = vmul.f32 %v178, %v373
        %v627 = vmul.f32 %v179, %v378
        %v628 = vmul.f32 %v180, %v383
        %v629 = vmul.f32 %v181, %v388
        %v630 = vmul.f32 %v182, %v393
        %v631 = vmul.f32 %v183, %v398
        %v632 = vmul.f32 %v184, %v403
        %v633 = vmul.f32 %v185, %v408
        %v634 = vmul.f32 %v186, %v413
        %v635 = vmul.f32 %v187, %v418
        %v636 = vmul.f32 %v188, %v423
        %v637 = vmul.f32 %v189, %v428
        %v638 = vmul.f32 %v190, %v433
        %v639 = vmul.f32 %v191, %v438
        %v640 = vmul.f32 %v192, %v443
        %v641 = vmul.f32 %v193, %v448
        %v642 = vmul.f32 %v194, %v453
        %v643 = vmul.f32 %v195, %v458
        %v644 = vmul.f32 %v196, %v463
        %v645 = vmul.f32 %v197, %v468
        %v646 = vmul.f32 %v198, %v473
        %v647 = vmul.f32 %v199, %v478
        %v648 = vmul.f32 %v200, %v483
        %v649 = vmul.f32 %v201, %v488
        %v650 = vmul.f32 %v202, %v493
        %v651 = vmul.f32 %v203, %v498
        %v652 = vmul.f32 %v204, %v503
        %v653 = vmul.f32 %v205, %v508
        %v654 = vmul.f32 %v206, %v513
        %v655 = vmul.f32 %v207, %v518
        %v656 = vmul.f32 %v208, %v523
        %v657 = vmul.f32 %v209, %v528
        %v658 = vmul.f32 %v210, %v533
        %v659 = vmul.f32 %v211, %v538
        %v660 = vmul.f32 %v212, %v543
        %v661 = vmul.f32 %v213, %v548
        %v662 = vmul.f32 %v214, %v553
        %v663 = vmul.f32 %v215, %v558
        %v664 = vmul.f32 %v216, %v563
        %v665 = vmul.f32 %v217, %v568
        %v666 = vmul.f32 %v218, %v573
        %v667 = vmul.f32 %v219, %v578
        %v668 = vmul.f32 %v220, %v583
        %v669 = vmul.f32 %v221, %v588
        %v670 = vmul.f32 %v222, %v593
        %v671 = vmul.f32 %v223, %v598
        %v672 = vmul.f32 %v224, %v603
        %v673 = vmul.f32 %v225, %v608
        %vm674 = vcmask 523264
        %v675 = vsel %vm674, %v610, 0.0
        %v676 = vsel %vm674, %v618, 0.0
        %v677 = vadd.f32 %v675, %v676
        %v678 = vsel %vm674, %v626, 0.0
        %v679 = vadd.f32 %v677, %v678
        %v680 = vsel %vm674, %v634, 0.0
        %v681 = vadd.f32 %v679, %v680
        %v682 = vsel %vm674, %v642, 0.0
        %v683 = vadd.f32 %v681, %v682
        %v684 = vsel %vm674, %v650, 0.0
        %v685 = vadd.f32 %v683, %v684
        %v686 = vsel %vm674, %v658, 0.0
        %v687 = vadd.f32 %v685, %v686
        %v688 = vsel %vm674, %v666, 0.0
        %v689 = vadd.f32 %v687, %v688
        %v690 = vsel %vm674, %v611, 0.0
        %v691 = vsel %vm674, %v619, 0.0
        %v692 = vadd.f32 %v690, %v691
        %v693 = vsel %vm674, %v627, 0.0
        %v694 = vadd.f32 %v692, %v693
        %v695 = vsel %vm674, %v635, 0.0
        %v696 = vadd.f32 %v694, %v695
        %v697 = vsel %vm674, %v643, 0.0
        %v698 = vadd.f32 %v696, %v697
        %v699 = vsel %vm674, %v651, 0.0
        %v700 = vadd.f32 %v698, %v699
        %v701 = vsel %vm674, %v659, 0.0
        %v702 = vadd.f32 %v700, %v701
        %v703 = vsel %vm674, %v667, 0.0
        %v704 = vadd.f32 %v702, %v703
        %v705 = vsel %vm674, %v612, 0.0
        %v706 = vsel %vm674, %v620, 0.0
        %v707 = vadd.f32 %v705, %v706
        %v708 = vsel %vm674, %v628, 0.0
        %v709 = vadd.f32 %v707, %v708
        %v710 = vsel %vm674, %v636, 0.0
        %v711 = vadd.f32 %v709, %v710
        %v712 = vsel %vm674, %v644, 0.0
        %v713 = vadd.f32 %v711, %v712
        %v714 = vsel %vm674, %v652, 0.0
        %v715 = vadd.f32 %v713, %v714
        %v716 = vsel %vm674, %v660, 0.0
        %v717 = vadd.f32 %v715, %v716
        %v718 = vsel %vm674, %v668, 0.0
        %v719 = vadd.f32 %v717, %v718
        %v720 = vsel %vm674, %v613, 0.0
        %v721 = vsel %vm674, %v621, 0.0
        %v722 = vadd.f32 %v720, %v721
        %v723 = vsel %vm674, %v629, 0.0
        %v724 = vadd.f32 %v722, %v723
        %v725 = vsel %vm674, %v637, 0.0
        %v726 = vadd.f32 %v724, %v725
        %v727 = vsel %vm674, %v645, 0.0
        %v728 = vadd.f32 %v726, %v727
        %v729 = vsel %vm674, %v653, 0.0
        %v730 = vadd.f32 %v728, %v729
        %v731 = vsel %vm674, %v661, 0.0
        %v732 = vadd.f32 %v730, %v731
        %v733 = vsel %vm674, %v669, 0.0
        %v734 = vadd.f32 %v732, %v733
        %v735 = vsel %vm674, %v614, 0.0
        %v736 = vsel %vm674, %v622, 0.0
        %v737 = vadd.f32 %v735, %v736
        %v738 = vsel %vm674, %v630, 0.0
        %v739 = vadd.f32 %v737, %v738
        %v740 = vsel %vm674, %v638, 0.0
        %v741 = vadd.f32 %v739, %v740
        %v742 = vsel %vm674, %v646, 0.0
        %v743 = vadd.f32 %v741, %v742
        %v744 = vsel %vm674, %v654, 0.0
        %v745 = vadd.f32 %v743, %v744
        %v746 = vsel %vm674, %v662, 0.0
        %v747 = vadd.f32 %v745, %v746
        %v748 = vsel %vm674, %v670, 0.0
        %v749 = vadd.f32 %v747, %v748
        %v750 = vsel %vm674, %v615, 0.0
        %v751 = vsel %vm674, %v623, 0.0
        %v752 = vadd.f32 %v750, %v751
        %v753 = vsel %vm674, %v631, 0.0
        %v754 = vadd.f32 %v752, %v753
        %v755 = vsel %vm674, %v639, 0.0
        %v756 = vadd.f32 %v754, %v755
        %v757 = vsel %vm674, %v647, 0.0
        %v758 = vadd.f32 %v756, %v757
        %v759 = vsel %vm674, %v655, 0.0
        %v760 = vadd.f32 %v758, %v759
        %v761 = vsel %vm674, %v663, 0.0
        %v762 = vadd.f32 %v760, %v761
        %v763 = vsel %vm674, %v671, 0.0
        %v764 = vadd.f32 %v762, %v763
        %v765 = vsel %vm674, %v616, 0.0
        %v766 = vsel %vm674, %v624, 0.0
        %v767 = vadd.f32 %v765, %v766
        %v768 = vsel %vm674, %v632, 0.0
        %v769 = vadd.f32 %v767, %v768
        %v770 = vsel %vm674, %v640, 0.0
        %v771 = vadd.f32 %v769, %v770
        %v772 = vsel %vm674, %v648, 0.0
        %v773 = vadd.f32 %v771, %v772
        %v774 = vsel %vm674, %v656, 0.0
        %v775 = vadd.f32 %v773, %v774
        %v776 = vsel %vm674, %v664, 0.0
        %v777 = vadd.f32 %v775, %v776
        %v778 = vsel %vm674, %v672, 0.0
        %v779 = vadd.f32 %v777, %v778
        %v780 = vsel %vm674, %v617, 0.0
        %v781 = vsel %vm674, %v625, 0.0
        %v782 = vadd.f32 %v780, %v781
        %v783 = vsel %vm674, %v633, 0.0
        %v784 = vadd.f32 %v782, %v783
        %v785 = vsel %vm674, %v641, 0.0
        %v786 = vadd.f32 %v784, %v785
        %v787 = vsel %vm674, %v649, 0.0
        %v788 = vadd.f32 %v786, %v787
        %v789 = vsel %vm674, %v657, 0.0
        %v790 = vadd.f32 %v788, %v789
        %v791 = vsel %vm674, %v665, 0.0
        %v792 = vadd.f32 %v790, %v791
        %v793 = vsel %vm674, %v673, 0.0
        %v794 = vadd.f32 %v792, %v793
        %795 = vst.msk [vmem:[%s161] sm:$0xff] %vm674, %v689
        %796 = vst.msk [vmem:[%s161 + $0x8] sm:$0xff] %vm674, %v704
        %797 = vst.msk [vmem:[%s161 + $0x10] sm:$0xff] %vm674, %v719
        %798 = vst.msk [vmem:[%s161 + $0x18] sm:$0xff] %vm674, %v734
        %799 = vst.msk [vmem:[%s161 + $0x20] sm:$0xff] %vm674, %v749
        %800 = vst.msk [vmem:[%s161 + $0x28] sm:$0xff] %vm674, %v764
        %801 = vst.msk [vmem:[%s161 + $0x30] sm:$0xff] %vm674, %v779
        %802 = vst.msk [vmem:[%s161 + $0x38] sm:$0xff] %vm674, %v794
        %s803 = sand.u32 %s74, 1
        %s804 = scalar_lea.sflag [#allocation4], %s803
        %s805 = sand.u32 %s74, 1
        %s806 = smul.addr %s805, 64
        %s807 = scalar_lea.vmem [#allocation5], %s806
        // Predicated region
        $region33: #{tpu_custom_call.1} parent=27 // pred_check
          %p808 = pneg %p84
        $region34: #{tpu_custom_call.1} parent=27 // pred_check_branch
          %810 = sbr.rel (%p808) target = $region36
        $region35: #{tpu_custom_call.1} parent=27 // pred_region
          %s812 = ssub.s32 1024, 1024
          %813 = vsyncadd %s804, %s812
          %s814 = smul.addr %s19, 8
          %s815 = smul.addr %s814, 128
          %s816 = scalar_lea.hbm %s2, %s815
          %s817 = sshll.u32 %s807, 4
          %s818 = int_to_ptr.vmem [resolvable:$true] %s817
          %823 = dma.vmem_to_hbm [thread:$0]  %s818, 1024, %s816, %s804, 128, 128, 8
        $region36: #{tpu_custom_call.1} parent=27 // pred_fallthru
          _
      $region28: #{tpu_custom_call.1} parent=5 // pred_fallthru
        _
      %p824 = scmp.le.s32.totalorder 2, %s14
      // Predicated region
      $region37: #{tpu_custom_call.1} parent=5 // pred_check
        %p825 = pneg %p824
      $region38: #{tpu_custom_call.1} parent=5 // pred_check_branch
        %827 = sbr.rel (%p825) target = $region40
      $region39: #{tpu_custom_call.1} parent=5 // pred_region
        %s828 = ssub.s32 %s14, 2
        // Predicated region
        $region41: #{tpu_custom_call.1} parent=39 // pred_check
          %p829 = pneg %p90
        $region42: #{tpu_custom_call.1} parent=39 // pred_check_branch
          %831 = sbr.rel (%p829) target = $region44
        $region43: #{tpu_custom_call.1} parent=39 // pred_region
          %s832 = sand.u32 %s75, 1
          %s833 = scalar_lea.sflag [#allocation4], %s832
          %s834 = sand.u32 %s75, 1
          %s835 = smul.addr %s834, 64
          %s836 = scalar_lea.vmem [#allocation5], %s835
          %837 = dma.done %s833, 1024
        $region44: #{tpu_custom_call.1} parent=39 // pred_fallthru
          _
      $region40: #{tpu_custom_call.1} parent=5 // pred_fallthru
        _
    $region6: #{tpu_custom_call.1} parent=1 // loop_footer
      %s18 = sadd.s32 1, %s14
    $region7: #{tpu_custom_call.1} parent=1 // loop_footer_branch
      %13 = sbr.rel target = $region3
    $region8: #{tpu_custom_call.1} parent=1 // loop_exit
      _
    %838 = vsyncpa [#allocation3], 1
    %s839 = scalar_lea.sflag [#allocation3], 1
    %840 = vsyncpa %s839, 1
    %841 = vsyncpa [#allocation4], 1
    %s842 = scalar_lea.sflag [#allocation4], 1
    %843 = vsyncpa %s842, 1

</llo_original>
